<compile_context>
chip_gen: v5e
topology: v5e:2x2
jax: 0.10.0
libtpu: 0.0.40
codegen_flags: <defaults>
</compile_context>

<pallas_src>
import functools

import jax
import jax.numpy as jnp
from jax.experimental import pallas as pl
from jax.experimental.pallas import tpu as pltpu

_LANES = 128
_MIN_ROWS = 8          # sublane quantum for f32
_MAX_BLOCK_ROWS = 2048  # (2048, 128) f32 block = 1 MiB; 3 arrays x 2 bufs = 6 MiB,
                        # comfortably under the scoped-VMEM default on v5e/v6e/v7x.


def _gumbel_train_kernel(x_ref, u_ref, o_ref, *, eps_log):
    x = x_ref[...].astype(jnp.float32)
    u = u_ref[...]
    # Fused logistic ("gumbel") noise: log(u+e) - log(1-u+e) == log((u+e)/(1-u+e)).
    g = jnp.log((u + eps_log) / (1.0 - u + eps_log))
    # sigmoid((x+g)/eps) >= 0.5  <=>  x + g >= 0   (for eps > 0)
    o_ref[...] = ((x + g) >= 0.0).astype(jnp.float32)


def _gumbel_eval_kernel(x_ref, o_ref):
    x = x_ref[...].astype(jnp.float32)
    o_ref[...] = (x >= 0.0).astype(jnp.float32)


def _pick_block_rows(rows):
    """Largest block row count <= _MAX_BLOCK_ROWS that evenly divides `rows`."""
    cand = _MAX_BLOCK_ROWS
    while cand > _MIN_ROWS:
        if rows % cand == 0:
            return cand
        cand //= 2
    return _MIN_ROWS


def gumbel_softmax_gate(logits, seed, *, eps=1.0, training=True):
    """Forward pass of GumbelSoftmax. logits: NCHW float array, eps > 0."""
    orig_shape = logits.shape
    total = logits.size

    # Flatten + pad to a multiple of 8*128 so tiles are always (8,128)-aligned.
    flat = logits.reshape(-1).astype(jnp.float32)
    pad = (-total) % (_MIN_ROWS * _LANES)
    if pad:
        flat = jnp.concatenate([flat, jnp.zeros((pad,), jnp.float32)])
    rows = flat.size // _LANES
    x2d = flat.reshape(rows, _LANES)

    block_rows = _pick_block_rows(rows)
    grid = (rows // block_rows,)
    block_spec = pl.BlockSpec((block_rows, _LANES), lambda i: (i, 0))
    out_shape = jax.ShapeDtypeStruct((rows, _LANES), jnp.float32)
    cparams = pltpu.CompilerParams(dimension_semantics=("parallel",))

    if training:
        # Uniform(0,1) noise, deterministic in `seed`, generated outside the
        # kernel (see TODO above) and streamed in alongside the logits.
        u = jax.random.uniform(
            jax.random.PRNGKey(seed), (rows, _LANES), dtype=jnp.float32)
        kernel = functools.partial(_gumbel_train_kernel, eps_log=1e-8)
        out2d = pl.pallas_call(
            kernel,
            out_shape=out_shape,
            grid_spec=pl.GridSpec(
                grid=grid,
                in_specs=[block_spec, block_spec],
                out_specs=block_spec,
            ),
            compiler_params=cparams,
        )(x2d, u)
    else:
        out2d = pl.pallas_call(
            _gumbel_eval_kernel,
            out_shape=out_shape,
            grid_spec=pl.GridSpec(
                grid=grid,
                in_specs=[block_spec],
                out_specs=block_spec,
            ),
            compiler_params=cparams,
        )(x2d)

    return out2d.reshape(-1)[:total].reshape(orig_shape)


if __name__ == "__main__":
    key = jax.random.PRNGKey(0)
    # NCHW logits, small shape: batch=2, channels=4, spatial=16x16
    logits = jax.random.normal(key, (2, 4, 16, 16), dtype=jnp.float32)

    # Training mode (stochastic hard gate via logistic/"gumbel" noise).
    out_train = gumbel_softmax_gate(logits, seed=1234, eps=1.0, training=True)
    out_train = jax.block_until_ready(out_train)

    # Eval mode (deterministic threshold at 0).
    out_eval = gumbel_softmax_gate(logits, seed=0, eps=1.0, training=False)
    out_eval = jax.block_until_ready(out_eval)

    # --- Sanity checks ---
    assert out_train.shape == logits.shape and out_train.dtype == jnp.float32
    assert out_eval.shape == logits.shape and out_eval.dtype == jnp.float32
    assert bool(jnp.all((out_train == 0.0) | (out_train == 1.0)))

    # Eval mode exactly matches (logits >= 0).
    ref_eval = (logits >= 0).astype(jnp.float32)
    assert bool(jnp.all(out_eval == ref_eval))

    # Training mode matches a pure-JAX reference built from the same noise
    # (ignore ulp-level boundary cases where logits + g is ~0).
    rows = logits.size // _LANES
    u_ref = jax.random.uniform(
        jax.random.PRNGKey(1234), (rows, _LANES), dtype=jnp.float32)
    g_ref = jnp.log((u_ref + 1e-8) / (1.0 - u_ref + 1e-8)).reshape(logits.shape)
    z_ref = logits + g_ref
    ref_train = (z_ref >= 0.0).astype(jnp.float32)
    away_from_boundary = jnp.abs(z_ref) > 1e-5
    assert bool(jnp.all((out_train == ref_train) | ~away_from_boundary))

    print("KERNEL_OK")
</pallas_src>

<mosaic_0001>
module attributes {stable_mosaic.version = 11 : i64} {
  func.func @_gumbel_train_kernel(%arg0: i32, %arg1: memref<16x128xf32, #tpu.memory_space<vmem>>, %arg2: memref<16x128xf32, #tpu.memory_space<vmem>>, %arg3: memref<16x128xf32, #tpu.memory_space<vmem>>) attributes {dimension_semantics = [#tpu.dimension_semantics<parallel>], iteration_bounds = array<i64: 1>, scalar_prefetch = 0 : i64, scratch_operands = 0 : i64, tpu.core_type = #tpu.core_type<tc>, window_params = [{transform_indices = @transform_0, window_bounds = array<i64: 16, 128>}, {transform_indices = @transform_1, window_bounds = array<i64: 16, 128>}, {transform_indices = @transform_2, window_bounds = array<i64: 16, 128>}]} {
    %c0 = arith.constant 0 : index
    %c0_0 = arith.constant 0 : index
    %0 = vector.load %arg1[%c0, %c0_0] : memref<16x128xf32, #tpu.memory_space<vmem>>, vector<16x128xf32>
    %c0_1 = arith.constant 0 : index
    %c0_2 = arith.constant 0 : index
    %1 = vector.load %arg2[%c0_1, %c0_2] : memref<16x128xf32, #tpu.memory_space<vmem>>, vector<16x128xf32>
    %cst = arith.constant 9.99999993E-9 : f32
    %2 = vector.broadcast %cst : f32 to vector<16x128xf32>
    %3 = arith.addf %1, %2 : vector<16x128xf32>
    %cst_3 = arith.constant 1.000000e+00 : f32
    %4 = vector.broadcast %cst_3 : f32 to vector<16x128xf32>
    %5 = arith.subf %4, %1 : vector<16x128xf32>
    %cst_4 = arith.constant 9.99999993E-9 : f32
    %6 = vector.broadcast %cst_4 : f32 to vector<16x128xf32>
    %7 = arith.addf %5, %6 : vector<16x128xf32>
    %8 = arith.divf %3, %7 : vector<16x128xf32>
    %9 = math.log %8 : vector<16x128xf32>
    %10 = arith.addf %0, %9 : vector<16x128xf32>
    %cst_5 = arith.constant 0.000000e+00 : f32
    %11 = vector.broadcast %cst_5 : f32 to vector<16x128xf32>
    %12 = arith.cmpf oge, %10, %11 : vector<16x128xf32>
    %13 = arith.extui %12 : vector<16x128xi1> to vector<16x128xi32>
    %14 = arith.sitofp %13 : vector<16x128xi32> to vector<16x128xf32>
    %c0_6 = arith.constant 0 : index
    %c0_7 = arith.constant 0 : index
    %15 = vector.load %arg3[%c0_6, %c0_7] : memref<16x128xf32, #tpu.memory_space<vmem>>, vector<16x128xf32>
    tpu.vector_store %arg3[%c0_6, %c0_7], %14 {strides = array<i32>} : memref<16x128xf32, #tpu.memory_space<vmem>>, vector<16x128xf32>,
    return
  }
  func.func @transform_0(%arg0: i32) -> (i32, i32) {
    %c0_i32 = arith.constant 0 : i32
    %c0_i32_0 = arith.constant 0 : i32
    return %arg0, %c0_i32 : i32, i32
  }
  func.func @transform_1(%arg0: i32) -> (i32, i32) {
    %c0_i32 = arith.constant 0 : i32
    %c0_i32_0 = arith.constant 0 : i32
    return %arg0, %c0_i32 : i32, i32
  }
  func.func @transform_2(%arg0: i32) -> (i32, i32) {
    %c0_i32 = arith.constant 0 : i32
    %c0_i32_0 = arith.constant 0 : i32
    return %arg0, %c0_i32 : i32, i32
  }
}

</mosaic_0001>

<llo_original>
// kernel: tpu_custom_call.1
$region0: #{tpu_custom_call.1}
  #allocation0 [shape = 'u32[]', space=smem, size = 0x4, offset = 0x4, fixed_abs, tag = 'smem constant byte address 0x4 - core index']
  #allocation1 [shape = 'u32[72,128]{1,0:T(1,128)}', space=vmem, size = 0x9000, scoped, tag = 'internal scratch']
  %s0 = inlined_call_operand.hbm [shape: f32[16,128], index: 0, kind: input, shape index: {}]
  %s1 = inlined_call_operand.hbm [shape: f32[16,128], index: 1, kind: input, shape index: {}]
  %s2 = inlined_call_operand.hbm [shape: f32[16,128], index: 2, kind: output, shape index: {}]
  %s3 = sld [smem:[#allocation0]]
  $region26: #{tpu_custom_call.1} parent=0
    _
  %s5 = ssub.s32 1, %s3
  %s6 = scalar_select 0, %s5, %s3
  $region1: #{tpu_custom_call.1} parent=0
    #allocation2 [shape = 'u8[8192]{0}', space=vmem, size = 0x2000, scoped, tag = 'input window, operand 0, single buffered']
    #allocation3 [shape = 's32[1]{0}', space=sflag, size = 0x4, scoped, tag = 'scoped memory for tpu_custom_call.1']
    #allocation4 [shape = 's32[1]{0}', space=sflag, size = 0x4, scoped, tag = 'scoped memory for tpu_custom_call.1']
    #allocation5 [shape = 'u8[8192]{0}', space=vmem, size = 0x2000, scoped, tag = 'input window, operand 1, single buffered']
    #allocation6 [shape = 's32[1]{0}', space=sflag, size = 0x4, scoped, tag = 'scoped memory for tpu_custom_call.1']
    #allocation7 [shape = 'u8[8192]{0}', space=vmem, size = 0x2000, scoped, tag = 'output window, operand 0, single buffered']
    %7 = vsyncpa [#allocation3], 0
    %8 = vsyncpa [#allocation6], 0
    %9 = vsyncpa [#allocation4], 0
    // Predicated region
    $region2: #{tpu_custom_call.1} parent=1 // pred_check
      _
    $region3: #{tpu_custom_call.1} parent=1 // pred_check_branch
      %11 = sbr.rel (0) target = $region5
    $region4: #{tpu_custom_call.1} parent=1 // pred_region
      %13 = vsyncadd [#allocation3], 0
      %s14 = sshll.u32 %s0, 4
      %s15 = int_to_ptr.hbm [resolvable:$true] %s14
      %s16 = sshll.u32 [#allocation2], 4
      %s17 = int_to_ptr.vmem [resolvable:$true] %s16
      %22 = dma.hbm_to_vmem [thread:$0]  %s15, 256, %s17, [#allocation3], 128, 128, 8
    $region5: #{tpu_custom_call.1} parent=1 // pred_fallthru
      _
    // Predicated region
    $region6: #{tpu_custom_call.1} parent=1 // pred_check
      _
    $region7: #{tpu_custom_call.1} parent=1 // pred_check_branch
      %24 = sbr.rel (0) target = $region9
    $region8: #{tpu_custom_call.1} parent=1 // pred_region
      %26 = vsyncadd [#allocation6], 0
      %s27 = sshll.u32 %s1, 4
      %s28 = int_to_ptr.hbm [resolvable:$true] %s27
      %s29 = sshll.u32 [#allocation5], 4
      %s30 = int_to_ptr.vmem [resolvable:$true] %s29
      %35 = dma.hbm_to_vmem [thread:$0]  %s28, 256, %s30, [#allocation6], 128, 128, 8
    $region9: #{tpu_custom_call.1} parent=1 // pred_fallthru
      _
    // Predicated region
    $region10: #{tpu_custom_call.1} parent=1 // pred_check
      _
    $region11: #{tpu_custom_call.1} parent=1 // pred_check_branch
      %37 = sbr.rel (0) target = $region13
    $region12: #{tpu_custom_call.1} parent=1 // pred_region
      %39 = dma.done [#allocation3], 256
    $region13: #{tpu_custom_call.1} parent=1 // pred_fallthru
      _
    // Predicated region
    $region14: #{tpu_custom_call.1} parent=1 // pred_check
      _
    $region15: #{tpu_custom_call.1} parent=1 // pred_check_branch
      %41 = sbr.rel (0) target = $region17
    $region16: #{tpu_custom_call.1} parent=1 // pred_region
      %43 = dma.done [#allocation6], 256
    $region17: #{tpu_custom_call.1} parent=1 // pred_fallthru
      _
    %v44 = vld [vmem:[#allocation2] sm:$0xff]
    %v45 = vld [vmem:[#allocation2 + $0x8] sm:$0xff]
    %v46 = vld [vmem:[#allocation5] sm:$0xff]
    %v47 = vld [vmem:[#allocation5 + $0x8] sm:$0xff]
    %v48 = vadd.f32 %v46, 1e-08
    %v49 = vadd.f32 %v47, 1e-08
    %v50 = vsub.f32 1.0, %v46
    %v51 = vsub.f32 1.0, %v47
    %v52 = vadd.f32 %v50, 1e-08
    %v53 = vadd.f32 %v51, 1e-08
    %v54 = vrcp.pop %v52
    %v55 = vmul.f32 %v52, %v54
    %v56 = vsub.f32 1.0, %v55
    %v57 = vmul.f32 %v54, %v56
    %v58 = vadd.f32 %v54, %v57
    %vm59 = vweird.f32 %v52
    %vm60 = vweird.f32 %v54
    %vm61 = vmor %vm59, %vm60
    %v62 = vsel %vm61, %v54, %v58
    %v63 = vand.u32 2147483647, %v52
    %vm64 = vcmp.eq.f32.partialorder %v63, 8.507059e+37
    %v65 = vand.u32 %v52, 2147483648
    %v66 = vor.u32 1.1754944e-38, %v65
    %v67 = vsel %vm64, %v66, %v62
    %v68 = vmul.f32 %v48, %v67
    %v69 = vrcp.pop %v53
    %v70 = vmul.f32 %v53, %v69
    %v71 = vsub.f32 1.0, %v70
    %v72 = vmul.f32 %v69, %v71
    %v73 = vadd.f32 %v69, %v72
    %vm74 = vweird.f32 %v53
    %vm75 = vweird.f32 %v69
    %vm76 = vmor %vm74, %vm75
    %v77 = vsel %vm76, %v69, %v73
    %v78 = vand.u32 2147483647, %v53
    %vm79 = vcmp.eq.f32.partialorder %v78, 8.507059e+37
    %v80 = vand.u32 %v53, 2147483648
    %v81 = vor.u32 1.1754944e-38, %v80
    %v82 = vsel %vm79, %v81, %v77
    %v83 = vmul.f32 %v49, %v82
    %v84 = vlog2.pop %v68
    %v85 = vmul.f32 %v84, 0.6931472
    %v86 = vlog2.pop %v83
    %v87 = vmul.f32 %v86, 0.6931472
    %v88 = vadd.f32 %v44, %v85
    %v89 = vadd.f32 %v45, %v87
    %vm90 = vcmp.ge.f32.partialorder %v88, 0.0
    %vm91 = vcmp.ge.f32.partialorder %v89, 0.0
    %v92 = vsel %vm90, 1, 0
    %v93 = vsel %vm91, 1, 0
    %v94 = vcvt.s32.f32 %v92
    %v95 = vcvt.s32.f32 %v93
    %96 = vst [vmem:[#allocation7] sm:$0xff] %v94
    %97 = vst [vmem:[#allocation7 + $0x8] sm:$0xff] %v95
    // Predicated region
    $region18: #{tpu_custom_call.1} parent=1 // pred_check
      _
    $region19: #{tpu_custom_call.1} parent=1 // pred_check_branch
      %99 = sbr.rel (0) target = $region21
    $region20: #{tpu_custom_call.1} parent=1 // pred_region
      %101 = vsyncadd [#allocation4], 0
      %s102 = sshll.u32 [#allocation7], 4
      %s103 = int_to_ptr.vmem [resolvable:$true] %s102
      %s104 = sshll.u32 %s2, 4
      %s105 = int_to_ptr.hbm [resolvable:$true] %s104
      %110 = dma.vmem_to_hbm [thread:$0]  %s103, 256, %s105, [#allocation4], 128, 128, 8
    $region21: #{tpu_custom_call.1} parent=1 // pred_fallthru
      _
    // Predicated region
    $region22: #{tpu_custom_call.1} parent=1 // pred_check
      _
    $region23: #{tpu_custom_call.1} parent=1 // pred_check_branch
      %112 = sbr.rel (0) target = $region25
    $region24: #{tpu_custom_call.1} parent=1 // pred_region
      %114 = dma.done [#allocation4], 256
    $region25: #{tpu_custom_call.1} parent=1 // pred_fallthru
      _
    %115 = vsyncpa [#allocation3], 1
    %116 = vsyncpa [#allocation6], 1
    %117 = vsyncpa [#allocation4], 1

</llo_original>
